<compile_context>
chip_gen: v7x
topology: tpu7x:2x2x1
jax: 0.10.0
libtpu: 0.0.40
codegen_flags: <defaults>
</compile_context>

<pallas_src>
import jax
import jax.numpy as jnp
from jax.experimental import pallas as pl
from jax.experimental.pallas import tpu as pltpu


_LANE = 128
# Per-tile budget for (input tile + output tile) bytes.  Double-buffered this
# keeps the VMEM working set at ~16 MiB on every TPU generation.
_TILE_PAIR_BUDGET = 8 * 1024 * 1024


def _normalize_kernel(stats_ref, img_ref, out_ref):
    # stats_ref: (TR, 2) per-row [scale, bias] = [1/std, -mean/std]
    # img_ref / out_ref: (TR, TC) tiles of the flattened (N*C, H*W) slab
    stats = stats_ref[...]
    scale = stats[:, 0:1]
    bias = stats[:, 1:2]
    x = img_ref[...].astype(scale.dtype)
    out_ref[...] = (x * scale + bias).astype(out_ref.dtype)


def _sublane(dtype):
    # Sub-32-bit dtypes pack along sublanes: 8 rows/vreg for 32-bit,
    # 16 for 16-bit, 32 for 8-bit.
    return {4: 8, 2: 16, 1: 32}.get(jnp.dtype(dtype).itemsize, 8)


def _pick_tiles(R, L, pair_bytes, sub):
    """Byte-budget driven tile selection: columns first, rows fill the rest."""
    budget_elems = max(_TILE_PAIR_BUDGET // pair_bytes, sub * _LANE)
    # Widest lane-aligned column tile that still leaves room for `sub` rows.
    col_cap = max(((budget_elems // sub) // _LANE) * _LANE, _LANE)
    TC = L if L <= col_cap else col_cap
    # Rows fill the remaining budget, aligned to the sublane packing.
    row_cap = max(((budget_elems // TC) // sub) * sub, sub)
    TR = R if R <= row_cap else row_cap
    return TR, TC


def normalization(img, mean, std):
    """(img - mean[:, None, None]) / std[:, None, None] for an NCHW image."""
    N, C, H, W = img.shape

    # Output dtype: follow the image if it is floating point, otherwise
    # promote to f32 (PyTorch int - float tensor promotes to float).
    if jnp.issubdtype(img.dtype, jnp.floating):
        out_dtype = img.dtype
    else:
        out_dtype = jnp.float32

    # bf16 compute for bf16 inputs (native VALU on v6e/v7x); f32 otherwise.
    compute_dtype = jnp.bfloat16 if img.dtype == jnp.bfloat16 else jnp.float32

    mean = jnp.asarray(mean, dtype=jnp.float32).reshape(-1)
    std = jnp.asarray(std, dtype=jnp.float32).reshape(-1)
    # Fold the divide into scale/bias once per channel (f32), then broadcast
    # to one (scale, bias) pair per (n, c) row of the flattened slab.
    scale_c = 1.0 / std                      # inf/nan for std == 0, as PyTorch
    bias_c = -mean * scale_c
    stats_c = jnp.stack([scale_c, bias_c], axis=-1)                  # (C, 2)
    R = N * C
    L = H * W
    stats_rows = (
        jnp.broadcast_to(stats_c[None], (N, C, 2))
        .reshape(R, 2)
        .astype(compute_dtype)
    )

    x2d = img.reshape(R, L)

    in_item = jnp.dtype(img.dtype).itemsize
    out_item = jnp.dtype(out_dtype).itemsize
    sub = max(_sublane(img.dtype), _sublane(out_dtype))
    TR, TC = _pick_tiles(R, L, in_item + out_item, sub)
    grid = (pl.cdiv(R, TR), pl.cdiv(L, TC))

    # Double-buffered working set (in + out tiles + stats) plus headroom.
    stats_item = jnp.dtype(compute_dtype).itemsize
    working = 2 * (TR * TC * (in_item + out_item) + TR * 2 * stats_item)
    vmem_limit = int(max(working + (2 << 20), 16 << 20))

    cost = pl.CostEstimate(
        flops=2 * R * L,
        transcendentals=0,
        bytes_accessed=R * L * (in_item + out_item) + R * 2 * stats_item,
    )

    out2d = pl.pallas_call(
        _normalize_kernel,
        out_shape=jax.ShapeDtypeStruct((R, L), out_dtype),
        grid_spec=pltpu.PrefetchScalarGridSpec(
            num_scalar_prefetch=0,
            grid=grid,
            in_specs=[
                pl.BlockSpec((TR, 2), lambda i, j: (i, 0)),    # [scale, bias]
                pl.BlockSpec((TR, TC), lambda i, j: (i, j)),   # image tile
            ],
            out_specs=pl.BlockSpec((TR, TC), lambda i, j: (i, j)),
        ),
        compiler_params=pltpu.CompilerParams(
            dimension_semantics=("parallel", "parallel"),
            vmem_limit_bytes=vmem_limit,
        ),
        cost_estimate=cost,
    )(stats_rows, x2d)

    return out2d.reshape(N, C, H, W)


if __name__ == "__main__":
    # Deterministic per-channel stats (ImageNet-style, extended to 4 channels).
    mean = jnp.array([0.485, 0.456, 0.406, 0.5], dtype=jnp.float32)
    std = jnp.array([0.229, 0.224, 0.225, 0.25], dtype=jnp.float32)

    key = jax.random.PRNGKey(0)
    img = jax.random.uniform(key, (2, 4, 16, 16), dtype=jnp.float32)

    out = jax.block_until_ready(normalization(img, mean, std))

    # Reference in plain JAX (matches PyTorch broadcasting semantics).
    ref = (img - mean.reshape(-1, 1, 1)) / std.reshape(-1, 1, 1)
    assert out.shape == img.shape
    assert out.dtype == img.dtype
    assert jnp.allclose(out, ref, atol=1e-5, rtol=1e-5)

    print("KERNEL_OK")
</pallas_src>

<mosaic_0001>
module attributes {stable_mosaic.version = 11 : i64} {
  func.func @_normalize_kernel(%arg0: i32, %arg1: i32, %arg2: memref<8x2xf32, #tpu.memory_space<vmem>>, %arg3: memref<8x256xf32, #tpu.memory_space<vmem>>, %arg4: memref<8x256xf32, #tpu.memory_space<vmem>>) attributes {dimension_semantics = [#tpu.dimension_semantics<parallel>, #tpu.dimension_semantics<parallel>], iteration_bounds = array<i64: 1, 1>, scalar_prefetch = 0 : i64, scratch_operands = 0 : i64, tpu.core_type = #tpu.core_type<tc>, window_params = [{transform_indices = @transform_0, window_bounds = array<i64: 8, 2>}, {transform_indices = @transform_1, window_bounds = array<i64: 8, 256>}, {transform_indices = @transform_2, window_bounds = array<i64: 8, 256>}]} {
    %c0 = arith.constant 0 : index
    %c0_0 = arith.constant 0 : index
    %0 = vector.load %arg2[%c0, %c0_0] : memref<8x2xf32, #tpu.memory_space<vmem>>, vector<8x2xf32>
    %1 = vector.extract_strided_slice %0 {offsets = [0, 0], sizes = [8, 1], strides = [1, 1]} : vector<8x2xf32> to vector<8x1xf32>
    %2 = vector.extract_strided_slice %0 {offsets = [0, 1], sizes = [8, 1], strides = [1, 1]} : vector<8x2xf32> to vector<8x1xf32>
    %c0_1 = arith.constant 0 : index
    %c0_2 = arith.constant 0 : index
    %3 = vector.load %arg3[%c0_1, %c0_2] : memref<8x256xf32, #tpu.memory_space<vmem>>, vector<8x256xf32>
    %4 = vector.broadcast %1 : vector<8x1xf32> to vector<8x256xf32>
    %5 = arith.mulf %3, %4 : vector<8x256xf32>
    %6 = vector.broadcast %2 : vector<8x1xf32> to vector<8x256xf32>
    %7 = arith.addf %5, %6 : vector<8x256xf32>
    %c0_3 = arith.constant 0 : index
    %c0_4 = arith.constant 0 : index
    %8 = vector.load %arg4[%c0_3, %c0_4] : memref<8x256xf32, #tpu.memory_space<vmem>>, vector<8x256xf32>
    tpu.vector_store %arg4[%c0_3, %c0_4], %7 {strides = array<i32>} : memref<8x256xf32, #tpu.memory_space<vmem>>, vector<8x256xf32>,
    return
  }
  func.func @transform_0(%arg0: i32, %arg1: i32) -> (i32, i32) {
    %c0_i32 = arith.constant 0 : i32
    %c0_i32_0 = arith.constant 0 : i32
    return %arg0, %c0_i32 : i32, i32
  }
  func.func @transform_1(%arg0: i32, %arg1: i32) -> (i32, i32) {
    %c0_i32 = arith.constant 0 : i32
    return %arg0, %arg1 : i32, i32
  }
  func.func @transform_2(%arg0: i32, %arg1: i32) -> (i32, i32) {
    %c0_i32 = arith.constant 0 : i32
    return %arg0, %arg1 : i32, i32
  }
}

</mosaic_0001>

<llo_original>
// kernel: tpu_custom_call.1
$region0: #{tpu_custom_call.1}
  #allocation0 [shape = 'u32[]', space=smem, size = 0x4, offset = 0x4, fixed_abs, tag = 'smem constant byte address 0x4 - core index']
  #allocation1 [shape = 'u32[144,128]{1,0:T(1,128)}', space=vmem, size = 0x12000, scoped, tag = 'internal scratch']
  %s0 = inlined_call_operand.vmem [shape: f32[8,2], index: 0, kind: input, shape index: {}]
  %s1 = inlined_call_operand.hbm [shape: f32[8,256], index: 1, kind: input, shape index: {}]
  %s2 = inlined_call_operand.hbm [shape: f32[8,256], index: 2, kind: output, shape index: {}]
  %s3 = sld [smem:[#allocation0]]
  $region22: #{tpu_custom_call.1} parent=0
    _
  %s5 = ssub.s32 1, %s3
  %s6 = scalar_select 0, %s5, %s3
  $region1: #{tpu_custom_call.1} parent=0
    #allocation2 [shape = 'u8[8192]{0}', space=vmem, size = 0x2000, scoped, tag = 'input window, operand 1, single buffered']
    #allocation3 [shape = 's32[1]{0}', space=sflag, size = 0x4, scoped, tag = 'scoped memory for tpu_custom_call.1']
    #allocation4 [shape = 's32[1]{0}', space=sflag, size = 0x4, scoped, tag = 'scoped memory for tpu_custom_call.1']
    #allocation5 [shape = 'u8[8192]{0}', space=vmem, size = 0x2000, scoped, tag = 'output window, operand 0, single buffered']
    %7 = vsyncpa [#allocation3], 0
    %8 = vsyncpa [#allocation4], 0
    // Predicated region
    $region2: #{tpu_custom_call.1} parent=1 // pred_check
      _
    $region3: #{tpu_custom_call.1} parent=1 // pred_check_branch
      %10 = sbr.rel (0) target = $region5
    $region4: #{tpu_custom_call.1} parent=1 // pred_region
      _
    $region5: #{tpu_custom_call.1} parent=1 // pred_fallthru
      _
    // Predicated region
    $region6: #{tpu_custom_call.1} parent=1 // pred_check
      _
    $region7: #{tpu_custom_call.1} parent=1 // pred_check_branch
      %12 = sbr.rel (0) target = $region9
    $region8: #{tpu_custom_call.1} parent=1 // pred_region
      %s14 = ssub.s32 256, 256
      %15 = vsyncadd [#allocation3], %s14
      %s17 = sshll.u32 [#allocation2], 4
      %s18 = int_to_ptr.vmem [resolvable:$true] %s17
      %20 = dma.hbm_to_vmem [thread:$0]  %s1, 256, %s18, [#allocation3]
    $region9: #{tpu_custom_call.1} parent=1 // pred_fallthru
      _
    // Predicated region
    $region10: #{tpu_custom_call.1} parent=1 // pred_check
      _
    $region11: #{tpu_custom_call.1} parent=1 // pred_check_branch
      %22 = sbr.rel (0) target = $region13
    $region12: #{tpu_custom_call.1} parent=1 // pred_region
      %23 = dma.done [#allocation3], 256
    $region13: #{tpu_custom_call.1} parent=1 // pred_fallthru
      _
    %v24 = vld [vmem:[%s0] sm:$0xff]
    %v25 = vld [vmem:[#allocation2] sm:$0xff]
    %v26 = vld [vmem:[#allocation2 + $0x8] sm:$0xff]
    %28 = vset.pattern.permute.xlu0 0
    %29 = vperm.xlu0 %28, %v24
    %v30 = vpop.permute.xlu0 %29
    %v32 = vmul.f32 %v25, %v30
    %v33 = vmul.f32 %v26, %v30
    %34 = vset.pattern.permute.xlu0 1
    %35 = vperm.xlu0 %34, %v24
    %v36 = vpop.permute.xlu0 %35
    %v38 = vadd.f32 %v32, %v36
    %v39 = vadd.f32 %v33, %v36
    %40 = vst [vmem:[#allocation5] sm:$0xff] %v38
    %41 = vst [vmem:[#allocation5 + $0x8] sm:$0xff] %v39
    // Predicated region
    $region14: #{tpu_custom_call.1} parent=1 // pred_check
      _
    $region15: #{tpu_custom_call.1} parent=1 // pred_check_branch
      %43 = sbr.rel (0) target = $region17
    $region16: #{tpu_custom_call.1} parent=1 // pred_region
      %s45 = ssub.s32 256, 256
      %46 = vsyncadd [#allocation4], %s45
      %s48 = sshll.u32 [#allocation5], 4
      %s49 = int_to_ptr.vmem [resolvable:$true] %s48
      %51 = dma.vmem_to_hbm [thread:$0]  %s49, 256, %s2, [#allocation4]
    $region17: #{tpu_custom_call.1} parent=1 // pred_fallthru
      _
    // Predicated region
    $region18: #{tpu_custom_call.1} parent=1 // pred_check
      _
    $region19: #{tpu_custom_call.1} parent=1 // pred_check_branch
      %53 = sbr.rel (0) target = $region21
    $region20: #{tpu_custom_call.1} parent=1 // pred_region
      %54 = dma.done [#allocation4], 256
    $region21: #{tpu_custom_call.1} parent=1 // pred_fallthru
      _
    %55 = vsyncpa [#allocation3], 1
    %56 = vsyncpa [#allocation4], 1

</llo_original>
